<compile_context>
chip_gen: v5e
topology: v5e:2x2
jax: 0.10.0
libtpu: 0.0.40
codegen_flags: <defaults>
</compile_context>

<pallas_src>
import functools

import jax
import jax.numpy as jnp
from jax import lax
from jax.experimental import pallas as pl
from jax.experimental.pallas import tpu as pltpu


def _bconv_kernel(x_ref, w_ref, col_ref, o_ref, *, width, o_ch):
    """Bilinear 3x3 conv (stride 1, pad 1) for one batch element.

    x_ref  : (1, C, S)    f32   flattened NCHW input plane, S = H*W
    w_ref  : (9, 2*O, C)  bf16  fused per-tap [Wu ; Wv] weights (resident)
    col_ref: (1, S)       i32   column index s % W (resident; avoids vector mod)
    o_ref  : (1, O, S)    f32   flattened NCHW output plane
    """
    s_dim = x_ref.shape[-1]
    x32 = x_ref[0]                                    # (C, S) f32
    col = col_ref[...]                                # (1, S) i32
    flat = lax.broadcasted_iota(jnp.int32, (1, s_dim), 1)

    acc = jnp.zeros((2 * o_ch, s_dim), jnp.float32)
    for t in range(9):                                # statically unrolled taps
        i, j = t // 3, t % 3
        d = (i - 1) * width + (j - 1)                 # flat source offset
        rolled = x32 if d == 0 else pltpu.roll(x32, shift=(-d) % s_dim, axis=1)
        # Mask positions whose source falls in the conv zero-padding; this also
        # zeroes every value the roll wrapped around.
        mask = None
        if i != 1:                                    # vertical (row) validity
            v = flat + (i - 1) * width
            mask = jnp.logical_and(v >= 0, v < s_dim)
        if j != 1:                                    # horizontal (col) validity
            hcol = col + (j - 1)
            hmask = jnp.logical_and(hcol >= 0, hcol < width)
            mask = hmask if mask is None else jnp.logical_and(mask, hmask)
        tap = rolled if mask is None else jnp.where(mask, rolled, 0.0)
        tap = tap.astype(jnp.bfloat16)                # bf16 MXU, f32 accumulate
        acc = acc + jnp.dot(w_ref[t], tap, preferred_element_type=jnp.float32)

    # Bilinear product; O on sublanes (no 128-lane channel padding), S on lanes
    # (lane-dense store), exact output bytes.
    o_ref[0] = (acc[:o_ch] * acc[o_ch:]).astype(o_ref.dtype)


@jax.jit
def bconv2d(x_nchw, w_u, w_v):
    """Forward of BConv2d: conv_u(x) * conv_v(x), k=3, stride=1, pad=1, no bias.

    x_nchw: (N, C, H, W) float32
    w_u, w_v: (O, C, 3, 3) float32 (PyTorch conv weight layout)
    returns: (N, O, H, W) float32
    """
    n, c, h, w = x_nchw.shape
    o_ch, c_in, kh, kw = w_u.shape
    assert c_in == c and kh == 3 and kw == 3
    s_dim = h * w

    # Fused per-tap weights: (O,C,3,3) -> (3,3,O,C) -> (9,O,C); concat u/v along
    # the output-channel axis -> (9, 2*O, C).  Tiny; resident in VMEM.
    def _prep(wt):
        return jnp.transpose(wt, (2, 3, 0, 1)).reshape(9, o_ch, c)

    w_fused = jnp.concatenate([_prep(w_u), _prep(w_v)],
                              axis=1).astype(jnp.bfloat16)          # (9, 2O, C)

    # Free view of the input (trailing contiguous dims merge) + tiny resident
    # column-index table (read once, avoids an in-kernel vector integer mod).
    x_flat = x_nchw.reshape(n, c, s_dim)                            # f32, no copy
    col_idx = (jnp.arange(s_dim, dtype=jnp.int32) % w).reshape(1, s_dim)

    # VMEM footprint estimate (double-buffered in/out blocks + resident tables +
    # in-kernel taps/accumulator) -> explicit budget, capped for v7x's 64 MiB.
    est = (2 * c * s_dim * 4            # x block, double buffered
           + 2 * o_ch * s_dim * 4       # out block, double buffered
           + 9 * 2 * o_ch * c * 2       # fused weights (resident)
           + s_dim * 4                  # column indices (resident)
           + 2 * o_ch * s_dim * 4       # f32 accumulator
           + 2 * c * s_dim * 4)         # staged tap copies
    vmem_limit = int(min(64 * 1024 * 1024, max(32 * 1024 * 1024, 2 * est)))

    flops = n * s_dim * (2 * 2 * 9 * c * o_ch + o_ch)
    bytes_accessed = (n * c * s_dim * 4 + n * o_ch * s_dim * 4
                      + 9 * 2 * o_ch * c * 2 + s_dim * 4)

    out = pl.pallas_call(
        functools.partial(_bconv_kernel, width=w, o_ch=o_ch),
        out_shape=jax.ShapeDtypeStruct((n, o_ch, s_dim), jnp.float32),
        grid_spec=pltpu.PrefetchScalarGridSpec(
            num_scalar_prefetch=0,
            grid=(n,),
            in_specs=[
                pl.BlockSpec((1, c, s_dim), lambda i: (i, 0, 0)),
                # Constant index maps: weights / col table DMA'd once, resident.
                pl.BlockSpec((9, 2 * o_ch, c), lambda i: (0, 0, 0)),
                pl.BlockSpec((1, s_dim), lambda i: (0, 0)),
            ],
            out_specs=pl.BlockSpec((1, o_ch, s_dim), lambda i: (i, 0, 0)),
        ),
        compiler_params=pltpu.CompilerParams(
            dimension_semantics=("parallel",),   # batch shards across v7x's 2 TCs
            vmem_limit_bytes=vmem_limit,
        ),
        cost_estimate=pl.CostEstimate(
            flops=flops, transcendentals=0, bytes_accessed=bytes_accessed),
    )(x_flat, w_fused, col_idx)

    # Free reshape back to NCHW (output is already channel-major, exact size).
    return out.reshape(n, o_ch, h, w)


def _reference(x_nchw, w_u, w_v):
    """Pure-JAX reference using lax conv (correctness check)."""
    dn = lax.conv_dimension_numbers(x_nchw.shape, w_u.shape,
                                    ("NCHW", "OIHW", "NCHW"))
    cu = lax.conv_general_dilated(x_nchw, w_u, (1, 1), ((1, 1), (1, 1)),
                                  dimension_numbers=dn)
    cv = lax.conv_general_dilated(x_nchw, w_v, (1, 1), ((1, 1), (1, 1)),
                                  dimension_numbers=dn)
    return cu * cv


if __name__ == "__main__":
    # Small shapes consistent with the module's forward.
    N, C_IN, C_OUT, H, W = 2, 4, 8, 16, 16
    key = jax.random.PRNGKey(0)
    kx, ku, kv = jax.random.split(key, 3)

    x = jax.random.normal(kx, (N, C_IN, H, W), dtype=jnp.float32)

    # kaiming_normal_(nonlinearity='linear', a=0.1): gain=1, std=1/sqrt(fan_in),
    # fan_in = C_IN * 3 * 3.
    fan_in = C_IN * 3 * 3
    std = 1.0 / jnp.sqrt(jnp.float32(fan_in))
    w_u = jax.random.normal(ku, (C_OUT, C_IN, 3, 3), dtype=jnp.float32) * std
    w_v = jax.random.normal(kv, (C_OUT, C_IN, 3, 3), dtype=jnp.float32) * std

    out = jax.block_until_ready(bconv2d(x, w_u, w_v))
    assert out.shape == (N, C_OUT, H, W), out.shape

    # Matched-precision reference: quantize inputs/weights to bf16 exactly as
    # the kernel does, accumulate in f32 -> only reduction-order noise remains.
    q = lambda a: a.astype(jnp.bfloat16).astype(jnp.float32)
    ref_bf16 = _reference(q(x), q(w_u), q(w_v))
    assert jnp.allclose(out, ref_bf16, atol=2e-3, rtol=2e-3), \
        "mismatch vs bf16-matched reference"

    # Loose sanity check vs the full-f32 reference (bounds bf16 input
    # quantization error only).
    ref_f32 = _reference(x, w_u, w_v)
    assert jnp.allclose(out, ref_f32, atol=2.5e-1, rtol=5e-2), \
        "mismatch vs f32 reference"

    print("KERNEL_OK")
</pallas_src>

<mosaic_0001>
module attributes {stable_mosaic.version = 11 : i64} {
  func.func @_bconv_kernel(%arg0: i32, %arg1: memref<1x4x256xf32, #tpu.memory_space<vmem>>, %arg2: memref<9x16x4xbf16, #tpu.memory_space<vmem>>, %arg3: memref<1x256xi32, #tpu.memory_space<vmem>>, %arg4: memref<1x8x256xf32, #tpu.memory_space<vmem>>) attributes {dimension_semantics = [#tpu.dimension_semantics<parallel>], iteration_bounds = array<i64: 2>, scalar_prefetch = 0 : i64, scratch_operands = 0 : i64, tpu.core_type = #tpu.core_type<tc>, window_params = [{transform_indices = @transform_0, window_bounds = array<i64: 1, 4, 256>}, {pipeline_mode = #tpu.pipeline_mode<synchronous>, transform_indices = @transform_1, window_bounds = array<i64: 9, 16, 4>}, {pipeline_mode = #tpu.pipeline_mode<synchronous>, transform_indices = @transform_2, window_bounds = array<i64: 1, 256>}, {transform_indices = @transform_3, window_bounds = array<i64: 1, 8, 256>}]} {
    %c0 = arith.constant 0 : index
    %c0_0 = arith.constant 0 : index
    %c0_1 = arith.constant 0 : index
    %0 = vector.load %arg1[%c0, %c0_0, %c0_1] : memref<1x4x256xf32, #tpu.memory_space<vmem>>, vector<1x4x256xf32>
    %1 = vector.shape_cast %0 : vector<1x4x256xf32> to vector<4x256xf32>
    %c0_2 = arith.constant 0 : index
    %c0_3 = arith.constant 0 : index
    %2 = vector.load %arg3[%c0_2, %c0_3] : memref<1x256xi32, #tpu.memory_space<vmem>>, vector<1x256xi32>
    %3 = tpu.iota {dimensions = array<i32: 1>} : vector<1x256xi32>
    %cst = arith.constant 0.000000e+00 : f32
    %4 = vector.broadcast %cst : f32 to vector<16x256xf32>
    %c17_i32 = arith.constant 17 : i32
    %5 = tpu.dynamic_rotate %1 by %c17_i32 dim 1 : vector<4x256xf32>, i32 -> vector<4x256xf32>
    %c-16_i32 = arith.constant -16 : i32
    %6 = vector.broadcast %c-16_i32 : i32 to vector<1x256xi32>
    %7 = arith.addi %3, %6 : vector<1x256xi32>
    %c0_i32 = arith.constant 0 : i32
    %8 = vector.broadcast %c0_i32 : i32 to vector<1x256xi32>
    %9 = arith.cmpi sge, %7, %8 : vector<1x256xi32>
    %c256_i32 = arith.constant 256 : i32
    %10 = vector.broadcast %c256_i32 : i32 to vector<1x256xi32>
    %11 = arith.cmpi slt, %7, %10 : vector<1x256xi32>
    %12 = arith.andi %9, %11 : vector<1x256xi1>
    %c-1_i32 = arith.constant -1 : i32
    %13 = vector.broadcast %c-1_i32 : i32 to vector<1x256xi32>
    %14 = arith.addi %2, %13 : vector<1x256xi32>
    %c0_i32_4 = arith.constant 0 : i32
    %15 = vector.broadcast %c0_i32_4 : i32 to vector<1x256xi32>
    %16 = arith.cmpi sge, %14, %15 : vector<1x256xi32>
    %c16_i32 = arith.constant 16 : i32
    %17 = vector.broadcast %c16_i32 : i32 to vector<1x256xi32>
    %18 = arith.cmpi slt, %14, %17 : vector<1x256xi32>
    %19 = arith.andi %16, %18 : vector<1x256xi1>
    %20 = arith.andi %12, %19 : vector<1x256xi1>
    %cst_5 = arith.constant 0.000000e+00 : f32
    %21 = vector.shape_cast %20 : vector<1x256xi1> to vector<1x256xi1>
    %22 = vector.broadcast %21 : vector<1x256xi1> to vector<4x256xi1>
    %23 = vector.broadcast %cst_5 : f32 to vector<4x256xf32>
    %24 = arith.select %22, %5, %23 : vector<4x256xi1>, vector<4x256xf32>
    %25 = arith.truncf %24 : vector<4x256xf32> to vector<4x256xbf16>
    %c0_6 = arith.constant 0 : index
    %c0_7 = arith.constant 0 : index
    %c0_8 = arith.constant 0 : index
    %26 = vector.load %arg2[%c0_6, %c0_7, %c0_8] : memref<9x16x4xbf16, #tpu.memory_space<vmem>>, vector<1x16x4xbf16>
    %27 = vector.shape_cast %26 : vector<1x16x4xbf16> to vector<16x4xbf16>
    %cst_9 = arith.constant dense<0.000000e+00> : vector<16x256xf32>
    %28 = tpu.matmul %27, %25, %cst_9 {dimension_numbers = #tpu.dot_dimension_numbers<[1], [0], [0], [1], [0, 0, 1, 1], [], []>} : vector<16x4xbf16>, vector<4x256xbf16>, vector<16x256xf32> -> vector<16x256xf32>
    %29 = arith.addf %4, %28 : vector<16x256xf32>
    %c16_i32_10 = arith.constant 16 : i32
    %30 = tpu.dynamic_rotate %1 by %c16_i32_10 dim 1 : vector<4x256xf32>, i32 -> vector<4x256xf32>
    %c-16_i32_11 = arith.constant -16 : i32
    %31 = vector.broadcast %c-16_i32_11 : i32 to vector<1x256xi32>
    %32 = arith.addi %3, %31 : vector<1x256xi32>
    %c0_i32_12 = arith.constant 0 : i32
    %33 = vector.broadcast %c0_i32_12 : i32 to vector<1x256xi32>
    %34 = arith.cmpi sge, %32, %33 : vector<1x256xi32>
    %c256_i32_13 = arith.constant 256 : i32
    %35 = vector.broadcast %c256_i32_13 : i32 to vector<1x256xi32>
    %36 = arith.cmpi slt, %32, %35 : vector<1x256xi32>
    %37 = arith.andi %34, %36 : vector<1x256xi1>
    %cst_14 = arith.constant 0.000000e+00 : f32
    %38 = vector.shape_cast %37 : vector<1x256xi1> to vector<1x256xi1>
    %39 = vector.broadcast %38 : vector<1x256xi1> to vector<4x256xi1>
    %40 = vector.broadcast %cst_14 : f32 to vector<4x256xf32>
    %41 = arith.select %39, %30, %40 : vector<4x256xi1>, vector<4x256xf32>
    %42 = arith.truncf %41 : vector<4x256xf32> to vector<4x256xbf16>
    %c1 = arith.constant 1 : index
    %c0_15 = arith.constant 0 : index
    %c0_16 = arith.constant 0 : index
    %43 = vector.load %arg2[%c1, %c0_15, %c0_16] : memref<9x16x4xbf16, #tpu.memory_space<vmem>>, vector<1x16x4xbf16>
    %44 = vector.shape_cast %43 : vector<1x16x4xbf16> to vector<16x4xbf16>
    %cst_17 = arith.constant dense<0.000000e+00> : vector<16x256xf32>
    %45 = tpu.matmul %44, %42, %cst_17 {dimension_numbers = #tpu.dot_dimension_numbers<[1], [0], [0], [1], [0, 0, 1, 1], [], []>} : vector<16x4xbf16>, vector<4x256xbf16>, vector<16x256xf32> -> vector<16x256xf32>
    %46 = arith.addf %29, %45 : vector<16x256xf32>
    %c15_i32 = arith.constant 15 : i32
    %47 = tpu.dynamic_rotate %1 by %c15_i32 dim 1 : vector<4x256xf32>, i32 -> vector<4x256xf32>
    %c-16_i32_18 = arith.constant -16 : i32
    %48 = vector.broadcast %c-16_i32_18 : i32 to vector<1x256xi32>
    %49 = arith.addi %3, %48 : vector<1x256xi32>
    %c0_i32_19 = arith.constant 0 : i32
    %50 = vector.broadcast %c0_i32_19 : i32 to vector<1x256xi32>
    %51 = arith.cmpi sge, %49, %50 : vector<1x256xi32>
    %c256_i32_20 = arith.constant 256 : i32
    %52 = vector.broadcast %c256_i32_20 : i32 to vector<1x256xi32>
    %53 = arith.cmpi slt, %49, %52 : vector<1x256xi32>
    %54 = arith.andi %51, %53 : vector<1x256xi1>
    %c1_i32 = arith.constant 1 : i32
    %55 = vector.broadcast %c1_i32 : i32 to vector<1x256xi32>
    %56 = arith.addi %2, %55 : vector<1x256xi32>
    %c0_i32_21 = arith.constant 0 : i32
    %57 = vector.broadcast %c0_i32_21 : i32 to vector<1x256xi32>
    %58 = arith.cmpi sge, %56, %57 : vector<1x256xi32>
    %c16_i32_22 = arith.constant 16 : i32
    %59 = vector.broadcast %c16_i32_22 : i32 to vector<1x256xi32>
    %60 = arith.cmpi slt, %56, %59 : vector<1x256xi32>
    %61 = arith.andi %58, %60 : vector<1x256xi1>
    %62 = arith.andi %54, %61 : vector<1x256xi1>
    %cst_23 = arith.constant 0.000000e+00 : f32
    %63 = vector.shape_cast %62 : vector<1x256xi1> to vector<1x256xi1>
    %64 = vector.broadcast %63 : vector<1x256xi1> to vector<4x256xi1>
    %65 = vector.broadcast %cst_23 : f32 to vector<4x256xf32>
    %66 = arith.select %64, %47, %65 : vector<4x256xi1>, vector<4x256xf32>
    %67 = arith.truncf %66 : vector<4x256xf32> to vector<4x256xbf16>
    %c2 = arith.constant 2 : index
    %c0_24 = arith.constant 0 : index
    %c0_25 = arith.constant 0 : index
    %68 = vector.load %arg2[%c2, %c0_24, %c0_25] : memref<9x16x4xbf16, #tpu.memory_space<vmem>>, vector<1x16x4xbf16>
    %69 = vector.shape_cast %68 : vector<1x16x4xbf16> to vector<16x4xbf16>
    %cst_26 = arith.constant dense<0.000000e+00> : vector<16x256xf32>
    %70 = tpu.matmul %69, %67, %cst_26 {dimension_numbers = #tpu.dot_dimension_numbers<[1], [0], [0], [1], [0, 0, 1, 1], [], []>} : vector<16x4xbf16>, vector<4x256xbf16>, vector<16x256xf32> -> vector<16x256xf32>
    %71 = arith.addf %46, %70 : vector<16x256xf32>
    %c1_i32_27 = arith.constant 1 : i32
    %72 = tpu.dynamic_rotate %1 by %c1_i32_27 dim 1 : vector<4x256xf32>, i32 -> vector<4x256xf32>
    %c-1_i32_28 = arith.constant -1 : i32
    %73 = vector.broadcast %c-1_i32_28 : i32 to vector<1x256xi32>
    %74 = arith.addi %2, %73 : vector<1x256xi32>
    %c0_i32_29 = arith.constant 0 : i32
    %75 = vector.broadcast %c0_i32_29 : i32 to vector<1x256xi32>
    %76 = arith.cmpi sge, %74, %75 : vector<1x256xi32>
    %c16_i32_30 = arith.constant 16 : i32
    %77 = vector.broadcast %c16_i32_30 : i32 to vector<1x256xi32>
    %78 = arith.cmpi slt, %74, %77 : vector<1x256xi32>
    %79 = arith.andi %76, %78 : vector<1x256xi1>
    %cst_31 = arith.constant 0.000000e+00 : f32
    %80 = vector.shape_cast %79 : vector<1x256xi1> to vector<1x256xi1>
    %81 = vector.broadcast %80 : vector<1x256xi1> to vector<4x256xi1>
    %82 = vector.broadcast %cst_31 : f32 to vector<4x256xf32>
    %83 = arith.select %81, %72, %82 : vector<4x256xi1>, vector<4x256xf32>
    %84 = arith.truncf %83 : vector<4x256xf32> to vector<4x256xbf16>
    %c3 = arith.constant 3 : index
    %c0_32 = arith.constant 0 : index
    %c0_33 = arith.constant 0 : index
    %85 = vector.load %arg2[%c3, %c0_32, %c0_33] : memref<9x16x4xbf16, #tpu.memory_space<vmem>>, vector<1x16x4xbf16>
    %86 = vector.shape_cast %85 : vector<1x16x4xbf16> to vector<16x4xbf16>
    %cst_34 = arith.constant dense<0.000000e+00> : vector<16x256xf32>
    %87 = tpu.matmul %86, %84, %cst_34 {dimension_numbers = #tpu.dot_dimension_numbers<[1], [0], [0], [1], [0, 0, 1, 1], [], []>} : vector<16x4xbf16>, vector<4x256xbf16>, vector<16x256xf32> -> vector<16x256xf32>
    %88 = arith.addf %71, %87 : vector<16x256xf32>
    %89 = arith.truncf %1 : vector<4x256xf32> to vector<4x256xbf16>
    %c4 = arith.constant 4 : index
    %c0_35 = arith.constant 0 : index
    %c0_36 = arith.constant 0 : index
    %90 = vector.load %arg2[%c4, %c0_35, %c0_36] : memref<9x16x4xbf16, #tpu.memory_space<vmem>>, vector<1x16x4xbf16>
    %91 = vector.shape_cast %90 : vector<1x16x4xbf16> to vector<16x4xbf16>
    %cst_37 = arith.constant dense<0.000000e+00> : vector<16x256xf32>
    %92 = tpu.matmul %91, %89, %cst_37 {dimension_numbers = #tpu.dot_dimension_numbers<[1], [0], [0], [1], [0, 0, 1, 1], [], []>} : vector<16x4xbf16>, vector<4x256xbf16>, vector<16x256xf32> -> vector<16x256xf32>
    %93 = arith.addf %88, %92 : vector<16x256xf32>
    %c255_i32 = arith.constant 255 : i32
    %94 = tpu.dynamic_rotate %1 by %c255_i32 dim 1 : vector<4x256xf32>, i32 -> vector<4x256xf32>
    %c1_i32_38 = arith.constant 1 : i32
    %95 = vector.broadcast %c1_i32_38 : i32 to vector<1x256xi32>
    %96 = arith.addi %2, %95 : vector<1x256xi32>
    %c0_i32_39 = arith.constant 0 : i32
    %97 = vector.broadcast %c0_i32_39 : i32 to vector<1x256xi32>
    %98 = arith.cmpi sge, %96, %97 : vector<1x256xi32>
    %c16_i32_40 = arith.constant 16 : i32
    %99 = vector.broadcast %c16_i32_40 : i32 to vector<1x256xi32>
    %100 = arith.cmpi slt, %96, %99 : vector<1x256xi32>
    %101 = arith.andi %98, %100 : vector<1x256xi1>
    %cst_41 = arith.constant 0.000000e+00 : f32
    %102 = vector.shape_cast %101 : vector<1x256xi1> to vector<1x256xi1>
    %103 = vector.broadcast %102 : vector<1x256xi1> to vector<4x256xi1>
    %104 = vector.broadcast %cst_41 : f32 to vector<4x256xf32>
    %105 = arith.select %103, %94, %104 : vector<4x256xi1>, vector<4x256xf32>
    %106 = arith.truncf %105 : vector<4x256xf32> to vector<4x256xbf16>
    %c5 = arith.constant 5 : index
    %c0_42 = arith.constant 0 : index
    %c0_43 = arith.constant 0 : index
    %107 = vector.load %arg2[%c5, %c0_42, %c0_43] : memref<9x16x4xbf16, #tpu.memory_space<vmem>>, vector<1x16x4xbf16>
    %108 = vector.shape_cast %107 : vector<1x16x4xbf16> to vector<16x4xbf16>
    %cst_44 = arith.constant dense<0.000000e+00> : vector<16x256xf32>
    %109 = tpu.matmul %108, %106, %cst_44 {dimension_numbers = #tpu.dot_dimension_numbers<[1], [0], [0], [1], [0, 0, 1, 1], [], []>} : vector<16x4xbf16>, vector<4x256xbf16>, vector<16x256xf32> -> vector<16x256xf32>
    %110 = arith.addf %93, %109 : vector<16x256xf32>
    %c241_i32 = arith.constant 241 : i32
    %111 = tpu.dynamic_rotate %1 by %c241_i32 dim 1 : vector<4x256xf32>, i32 -> vector<4x256xf32>
    %c16_i32_45 = arith.constant 16 : i32
    %112 = vector.broadcast %c16_i32_45 : i32 to vector<1x256xi32>
    %113 = arith.addi %3, %112 : vector<1x256xi32>
    %c0_i32_46 = arith.constant 0 : i32
    %114 = vector.broadcast %c0_i32_46 : i32 to vector<1x256xi32>
    %115 = arith.cmpi sge, %113, %114 : vector<1x256xi32>
    %c256_i32_47 = arith.constant 256 : i32
    %116 = vector.broadcast %c256_i32_47 : i32 to vector<1x256xi32>
    %117 = arith.cmpi slt, %113, %116 : vector<1x256xi32>
    %118 = arith.andi %115, %117 : vector<1x256xi1>
    %c-1_i32_48 = arith.constant -1 : i32
    %119 = vector.broadcast %c-1_i32_48 : i32 to vector<1x256xi32>
    %120 = arith.addi %2, %119 : vector<1x256xi32>
    %c0_i32_49 = arith.constant 0 : i32
    %121 = vector.broadcast %c0_i32_49 : i32 to vector<1x256xi32>
    %122 = arith.cmpi sge, %120, %121 : vector<1x256xi32>
    %c16_i32_50 = arith.constant 16 : i32
    %123 = vector.broadcast %c16_i32_50 : i32 to vector<1x256xi32>
    %124 = arith.cmpi slt, %120, %123 : vector<1x256xi32>
    %125 = arith.andi %122, %124 : vector<1x256xi1>
    %126 = arith.andi %118, %125 : vector<1x256xi1>
    %cst_51 = arith.constant 0.000000e+00 : f32
    %127 = vector.shape_cast %126 : vector<1x256xi1> to vector<1x256xi1>
    %128 = vector.broadcast %127 : vector<1x256xi1> to vector<4x256xi1>
    %129 = vector.broadcast %cst_51 : f32 to vector<4x256xf32>
    %130 = arith.select %128, %111, %129 : vector<4x256xi1>, vector<4x256xf32>
    %131 = arith.truncf %130 : vector<4x256xf32> to vector<4x256xbf16>
    %c6 = arith.constant 6 : index
    %c0_52 = arith.constant 0 : index
    %c0_53 = arith.constant 0 : index
    %132 = vector.load %arg2[%c6, %c0_52, %c0_53] : memref<9x16x4xbf16, #tpu.memory_space<vmem>>, vector<1x16x4xbf16>
    %133 = vector.shape_cast %132 : vector<1x16x4xbf16> to vector<16x4xbf16>
    %cst_54 = arith.constant dense<0.000000e+00> : vector<16x256xf32>
    %134 = tpu.matmul %133, %131, %cst_54 {dimension_numbers = #tpu.dot_dimension_numbers<[1], [0], [0], [1], [0, 0, 1, 1], [], []>} : vector<16x4xbf16>, vector<4x256xbf16>, vector<16x256xf32> -> vector<16x256xf32>
    %135 = arith.addf %110, %134 : vector<16x256xf32>
    %c240_i32 = arith.constant 240 : i32
    %136 = tpu.dynamic_rotate %1 by %c240_i32 dim 1 : vector<4x256xf32>, i32 -> vector<4x256xf32>
    %c16_i32_55 = arith.constant 16 : i32
    %137 = vector.broadcast %c16_i32_55 : i32 to vector<1x256xi32>
    %138 = arith.addi %3, %137 : vector<1x256xi32>
    %c0_i32_56 = arith.constant 0 : i32
    %139 = vector.broadcast %c0_i32_56 : i32 to vector<1x256xi32>
    %140 = arith.cmpi sge, %138, %139 : vector<1x256xi32>
    %c256_i32_57 = arith.constant 256 : i32
    %141 = vector.broadcast %c256_i32_57 : i32 to vector<1x256xi32>
    %142 = arith.cmpi slt, %138, %141 : vector<1x256xi32>
    %143 = arith.andi %140, %142 : vector<1x256xi1>
    %cst_58 = arith.constant 0.000000e+00 : f32
    %144 = vector.shape_cast %143 : vector<1x256xi1> to vector<1x256xi1>
    %145 = vector.broadcast %144 : vector<1x256xi1> to vector<4x256xi1>
    %146 = vector.broadcast %cst_58 : f32 to vector<4x256xf32>
    %147 = arith.select %145, %136, %146 : vector<4x256xi1>, vector<4x256xf32>
    %148 = arith.truncf %147 : vector<4x256xf32> to vector<4x256xbf16>
    %c7 = arith.constant 7 : index
    %c0_59 = arith.constant 0 : index
    %c0_60 = arith.constant 0 : index
    %149 = vector.load %arg2[%c7, %c0_59, %c0_60] : memref<9x16x4xbf16, #tpu.memory_space<vmem>>, vector<1x16x4xbf16>
    %150 = vector.shape_cast %149 : vector<1x16x4xbf16> to vector<16x4xbf16>
    %cst_61 = arith.constant dense<0.000000e+00> : vector<16x256xf32>
    %151 = tpu.matmul %150, %148, %cst_61 {dimension_numbers = #tpu.dot_dimension_numbers<[1], [0], [0], [1], [0, 0, 1, 1], [], []>} : vector<16x4xbf16>, vector<4x256xbf16>, vector<16x256xf32> -> vector<16x256xf32>
    %152 = arith.addf %135, %151 : vector<16x256xf32>
    %c239_i32 = arith.constant 239 : i32
    %153 = tpu.dynamic_rotate %1 by %c239_i32 dim 1 : vector<4x256xf32>, i32 -> vector<4x256xf32>
    %c16_i32_62 = arith.constant 16 : i32
    %154 = vector.broadcast %c16_i32_62 : i32 to vector<1x256xi32>
    %155 = arith.addi %3, %154 : vector<1x256xi32>
    %c0_i32_63 = arith.constant 0 : i32
    %156 = vector.broadcast %c0_i32_63 : i32 to vector<1x256xi32>
    %157 = arith.cmpi sge, %155, %156 : vector<1x256xi32>
    %c256_i32_64 = arith.constant 256 : i32
    %158 = vector.broadcast %c256_i32_64 : i32 to vector<1x256xi32>
    %159 = arith.cmpi slt, %155, %158 : vector<1x256xi32>
    %160 = arith.andi %157, %159 : vector<1x256xi1>
    %c1_i32_65 = arith.constant 1 : i32
    %161 = vector.broadcast %c1_i32_65 : i32 to vector<1x256xi32>
    %162 = arith.addi %2, %161 : vector<1x256xi32>
    %c0_i32_66 = arith.constant 0 : i32
    %163 = vector.broadcast %c0_i32_66 : i32 to vector<1x256xi32>
    %164 = arith.cmpi sge, %162, %163 : vector<1x256xi32>
    %c16_i32_67 = arith.constant 16 : i32
    %165 = vector.broadcast %c16_i32_67 : i32 to vector<1x256xi32>
    %166 = arith.cmpi slt, %162, %165 : vector<1x256xi32>
    %167 = arith.andi %164, %166 : vector<1x256xi1>
    %168 = arith.andi %160, %167 : vector<1x256xi1>
    %cst_68 = arith.constant 0.000000e+00 : f32
    %169 = vector.shape_cast %168 : vector<1x256xi1> to vector<1x256xi1>
    %170 = vector.broadcast %169 : vector<1x256xi1> to vector<4x256xi1>
    %171 = vector.broadcast %cst_68 : f32 to vector<4x256xf32>
    %172 = arith.select %170, %153, %171 : vector<4x256xi1>, vector<4x256xf32>
    %173 = arith.truncf %172 : vector<4x256xf32> to vector<4x256xbf16>
    %c8 = arith.constant 8 : index
    %c0_69 = arith.constant 0 : index
    %c0_70 = arith.constant 0 : index
    %174 = vector.load %arg2[%c8, %c0_69, %c0_70] : memref<9x16x4xbf16, #tpu.memory_space<vmem>>, vector<1x16x4xbf16>
    %175 = vector.shape_cast %174 : vector<1x16x4xbf16> to vector<16x4xbf16>
    %cst_71 = arith.constant dense<0.000000e+00> : vector<16x256xf32>
    %176 = tpu.matmul %175, %173, %cst_71 {dimension_numbers = #tpu.dot_dimension_numbers<[1], [0], [0], [1], [0, 0, 1, 1], [], []>} : vector<16x4xbf16>, vector<4x256xbf16>, vector<16x256xf32> -> vector<16x256xf32>
    %177 = arith.addf %152, %176 : vector<16x256xf32>
    %178 = vector.extract_strided_slice %177 {offsets = [0, 0], sizes = [8, 256], strides = [1, 1]} : vector<16x256xf32> to vector<8x256xf32>
    %179 = vector.extract_strided_slice %177 {offsets = [8, 0], sizes = [8, 256], strides = [1, 1]} : vector<16x256xf32> to vector<8x256xf32>
    %180 = arith.mulf %178, %179 : vector<8x256xf32>
    %c0_72 = arith.constant 0 : index
    %c0_73 = arith.constant 0 : index
    %c0_74 = arith.constant 0 : index
    %181 = vector.load %arg4[%c0_72, %c0_73, %c0_74] : memref<1x8x256xf32, #tpu.memory_space<vmem>>, vector<1x8x256xf32>
    %182 = vector.shape_cast %181 : vector<1x8x256xf32> to vector<8x256xf32>
    %183 = vector.shape_cast %180 : vector<8x256xf32> to vector<1x8x256xf32>
    tpu.vector_store %arg4[%c0_72, %c0_73, %c0_74], %183 {strides = array<i32>} : memref<1x8x256xf32, #tpu.memory_space<vmem>>, vector<1x8x256xf32>,
    return
  }
  func.func @transform_0(%arg0: i32) -> (i32, i32, i32) {
    %c0_i32 = arith.constant 0 : i32
    %c0_i32_0 = arith.constant 0 : i32
    %c0_i32_1 = arith.constant 0 : i32
    return %arg0, %c0_i32, %c0_i32_0 : i32, i32, i32
  }
  func.func @transform_1(%arg0: i32) -> (i32, i32, i32) {
    %c0_i32 = arith.constant 0 : i32
    %c0_i32_0 = arith.constant 0 : i32
    %c0_i32_1 = arith.constant 0 : i32
    %c0_i32_2 = arith.constant 0 : i32
    return %c0_i32, %c0_i32_0, %c0_i32_1 : i32, i32, i32
  }
  func.func @transform_2(%arg0: i32) -> (i32, i32) {
    %c0_i32 = arith.constant 0 : i32
    %c0_i32_0 = arith.constant 0 : i32
    %c0_i32_1 = arith.constant 0 : i32
    return %c0_i32, %c0_i32_0 : i32, i32
  }
  func.func @transform_3(%arg0: i32) -> (i32, i32, i32) {
    %c0_i32 = arith.constant 0 : i32
    %c0_i32_0 = arith.constant 0 : i32
    %c0_i32_1 = arith.constant 0 : i32
    return %arg0, %c0_i32, %c0_i32_0 : i32, i32, i32
  }
}

</mosaic_0001>

<llo_original>
// kernel: bconv2d.1
$region0: #{bconv2d.1}
  #allocation0 [shape = 'u32[]', space=smem, size = 0x4, offset = 0x4, fixed_abs, tag = 'smem constant byte address 0x4 - core index']
  #allocation1 [shape = 'u32[72,128]{1,0:T(1,128)}', space=vmem, size = 0x9000, scoped, tag = 'internal scratch']
  %s0 = inlined_call_operand.vmem [shape: f32[2,4,256], index: 0, kind: input, shape index: {}]
  %s1 = inlined_call_operand.vmem [shape: bf16[9,16,4], index: 1, kind: input, shape index: {}]
  %s2 = inlined_call_operand.vmem [shape: s32[1,256], index: 2, kind: input, shape index: {}]
  %s3 = inlined_call_operand.vmem [shape: f32[2,8,256], index: 3, kind: output, shape index: {}]
  %s4 = sld [smem:[#allocation0]]
  $region45: #{bconv2d.1} parent=0
    _
  %s6 = ssub.s32 1, %s4
  %s7 = scalar_select 0, %s6, %s4
  loop: start=0, step=1, limit=4
  $region2: #{bconv2d.1} parent=0 // loop_pre_header
    _
  $region3: #{bconv2d.1} parent=0 // loop_header
    %s9 = sphi 0, %s13
    %p10 = scmp.ge.s32.totalorder %s9, 4
    %s19 = sphi 0, %s21
    %s22 = sphi 0, %s19
    %s23 = sphi 0, %s22
    %s39 = sphi 0, %s23
    %s43 = sphi 0, %s43
    %s45 = sphi 0, %s43
    %s46 = sphi 0, %s45
    %s60 = sphi 0, %s46
    %s64 = sphi 0, %s64
    %s66 = sphi 0, %s64
    %s67 = sphi 0, %s66
    %s81 = sphi 0, %s67
    %s87 = sphi 0, %s89
    %s90 = sphi 0, %s87
    %s91 = sphi 0, %s90
    %s107 = sphi 0, %s91
  $region4: #{bconv2d.1} parent=0 // loop_header_branch
    %12 = sbr.rel (%p10) target = $region8
  $region5: #{bconv2d.1} parent=0 // loop_body
    %s14 = ssub.s32 %s9, 1
    %s15 = ssub.s32 %s9, 2
    %s16 = sadd.s32 %s9, 1
    %s17 = ssub.s32 %s9, %s16
    %p18 = scmp.eq.s32.totalorder %s17, 0
    %s20 = sadd.s32 %s19, 1
    %s21 = scalar_select %p18, %s19, %s20
    %p24 = pneg %p18
    %p25 = scmp.eq.s32.totalorder %s9, 1
    %p26 = por %p24, %p25
    %p27 = scmp.ne.s32.totalorder %s19, %s22
    %p28 = scmp.eq.s32.totalorder %s9, 0
    %p29 = por %p27, %p28
    %p30 = scmp.ne.s32.totalorder %s19, %s22
    %p31 = scmp.eq.s32.totalorder %s14, 1
    %p32 = por %p30, %p31
    %p33 = scmp.ne.s32.totalorder %s22, %s23
    %p34 = scmp.eq.s32.totalorder %s14, 0
    %p35 = por %p33, %p34
    %p36 = scmp.ne.s32.totalorder %s22, %s23
    %p37 = scmp.eq.s32.totalorder %s15, 1
    %p38 = por %p36, %p37
    %p40 = scmp.ne.s32.totalorder %s23, %s39
    %p41 = scmp.eq.s32.totalorder %s15, 0
    %p42 = por %p40, %p41
    %s44 = sadd.s32 %s43, 1
    %p47 = scmp.eq.s32.totalorder %s9, 1
    %p48 = scmp.ne.s32.totalorder %s43, %s45
    %p49 = scmp.eq.s32.totalorder %s9, 0
    %p50 = por %p48, %p49
    %p51 = scmp.ne.s32.totalorder %s43, %s45
    %p52 = scmp.eq.s32.totalorder %s14, 1
    %p53 = por %p51, %p52
    %p54 = scmp.ne.s32.totalorder %s45, %s46
    %p55 = scmp.eq.s32.totalorder %s14, 0
    %p56 = por %p54, %p55
    %p57 = scmp.ne.s32.totalorder %s45, %s46
    %p58 = scmp.eq.s32.totalorder %s15, 1
    %p59 = por %p57, %p58
    %p61 = scmp.ne.s32.totalorder %s46, %s60
    %p62 = scmp.eq.s32.totalorder %s15, 0
    %p63 = por %p61, %p62
    %s65 = sadd.s32 %s64, 1
    %p68 = scmp.eq.s32.totalorder %s9, 1
    %p69 = scmp.ne.s32.totalorder %s64, %s66
    %p70 = scmp.eq.s32.totalorder %s9, 0
    %p71 = por %p69, %p70
    %p72 = scmp.ne.s32.totalorder %s64, %s66
    %p73 = scmp.eq.s32.totalorder %s14, 1
    %p74 = por %p72, %p73
    %p75 = scmp.ne.s32.totalorder %s66, %s67
    %p76 = scmp.eq.s32.totalorder %s14, 0
    %p77 = por %p75, %p76
    %p78 = scmp.ne.s32.totalorder %s66, %s67
    %p79 = scmp.eq.s32.totalorder %s15, 1
    %p80 = por %p78, %p79
    %p82 = scmp.ne.s32.totalorder %s67, %s81
    %p83 = scmp.eq.s32.totalorder %s15, 0
    %p84 = por %p82, %p83
    %s85 = ssub.s32 %s9, %s16
    %p86 = scmp.eq.s32.totalorder %s85, 0
    %s88 = sadd.s32 %s87, 1
    %s89 = scalar_select %p86, %s87, %s88
    %p92 = pneg %p86
    %p93 = scmp.eq.s32.totalorder %s9, 1
    %p94 = por %p92, %p93
    %p95 = scmp.ne.s32.totalorder %s87, %s90
    %p96 = scmp.eq.s32.totalorder %s9, 0
    %p97 = por %p95, %p96
    %p98 = scmp.ne.s32.totalorder %s87, %s90
    %p99 = scmp.eq.s32.totalorder %s14, 1
    %p100 = por %p98, %p99
    %p101 = scmp.ne.s32.totalorder %s90, %s91
    %p102 = scmp.eq.s32.totalorder %s14, 0
    %p103 = por %p101, %p102
    %p104 = scmp.ne.s32.totalorder %s90, %s91
    %p105 = scmp.eq.s32.totalorder %s15, 1
    %p106 = por %p104, %p105
    %p108 = scmp.ne.s32.totalorder %s91, %s107
    %p109 = scmp.eq.s32.totalorder %s15, 0
    %p110 = por %p108, %p109
    %p111 = scmp.le.s32.totalorder 1, %s9
    %p112 = scmp.lt.s32.totalorder %s9, 3
    %p113 = pnand %p111, %p112
    %p114 = pneg %p113
    // Predicated region
    $region9: #{bconv2d.1} parent=5 // pred_check
      _
    $region10: #{bconv2d.1} parent=5 // pred_check_branch
      %116 = sbr.rel (%p113) target = $region12
    $region11: #{bconv2d.1} parent=5 // pred_region
      %s117 = ssub.s32 %s9, 1
      // Predicated region
      $region13: #{bconv2d.1} parent=11 // pred_check
        %p118 = pneg %p56
      $region14: #{bconv2d.1} parent=11 // pred_check_branch
        %120 = sbr.rel (%p118) target = $region16
      $region15: #{bconv2d.1} parent=11 // pred_region
        _
      $region16: #{bconv2d.1} parent=11 // pred_fallthru
        _
      // Predicated region
      $region17: #{bconv2d.1} parent=11 // pred_check
        %p121 = pneg %p77
      $region18: #{bconv2d.1} parent=11 // pred_check_branch
        %123 = sbr.rel (%p121) target = $region20
      $region19: #{bconv2d.1} parent=11 // pred_region
        _
      $region20: #{bconv2d.1} parent=11 // pred_fallthru
        _
    $region12: #{bconv2d.1} parent=5 // pred_fallthru
      _
    %p124 = scmp.lt.s32.totalorder %s9, 2
    // Predicated region
    $region21: #{bconv2d.1} parent=5 // pred_check
      %p125 = pneg %p124
    $region22: #{bconv2d.1} parent=5 // pred_check_branch
      %127 = sbr.rel (%p125) target = $region24
    $region23: #{bconv2d.1} parent=5 // pred_region
      // Predicated region
      $region25: #{bconv2d.1} parent=23 // pred_check
        %p128 = pneg %p29
      $region26: #{bconv2d.1} parent=23 // pred_check_branch
        %130 = sbr.rel (%p128) target = $region28
      $region27: #{bconv2d.1} parent=23 // pred_region
        %p131 = scmp.lt.s32.totalorder %s9, 1
        %s132 = scalar_select %p131, %s9, 1
        %s133 = smul.addr %s132, 2
        %s134 = smul.addr %s133, 4
        %s135 = scalar_lea.vmem %s0, %s134
      $region28: #{bconv2d.1} parent=23 // pred_fallthru
        _
    $region24: #{bconv2d.1} parent=5 // pred_fallthru
      _
    %p136 = scmp.le.s32.totalorder 1, %s9
    %p137 = scmp.lt.s32.totalorder %s9, 3
    %p138 = pnand %p136, %p137
    %p139 = pneg %p138
    // Predicated region
    $region29: #{bconv2d.1} parent=5 // pred_check
      _
    $region30: #{bconv2d.1} parent=5 // pred_check_branch
      %141 = sbr.rel (%p138) target = $region32
    $region31: #{bconv2d.1} parent=5 // pred_region
      %s142 = ssub.s32 %s9, 1
      %p143 = scmp.lt.s32.totalorder %s14, 1
      %s144 = scalar_select %p143, %s14, 1
      %s145 = smul.addr %s144, 2
      %s146 = smul.addr %s145, 4
      %s147 = scalar_lea.vmem %s0, %s146
      %p148 = pneg %p35
      %p149 = pneg %p32
      %p150 = pneg %p56
      %p151 = pneg %p53
      %p152 = pneg %p77
      %p153 = pneg %p74
      %p154 = pneg %p103
      %p155 = pneg %p100
      %p156 = scmp.lt.s32.totalorder %s14, 1
      %s157 = scalar_select %p156, %s14, 1
      %s158 = smul.addr %s157, 2
      %s159 = smul.addr %s158, 8
      %s160 = scalar_lea.vmem %s3, %s159
      %p161 = scmp.lt.s32.totalorder %s14, 1
      %s162 = scalar_select %p161, %s14, 1
      %s163 = smul.addr %s162, 2
      %s164 = smul.addr %s163, 4
      %s165 = scalar_lea.vmem %s0, %s164
      %p166 = scmp.lt.s32.totalorder %s14, 1
      %s167 = scalar_select %p166, %s14, 1
      %s168 = smul.addr %s167, 2
      %s169 = smul.addr %s168, 8
      %s170 = scalar_lea.vmem %s3, %s169
      %v172 = vld [vmem:[%s165] sm:$0xff]
      %v173 = vld [vmem:[%s2] sm:$0x3]
      %v174 = vlaneseq
      %v175 = vand.u32 %v174, 127
      %v176 = vadd.s32 %v175, 128
      %178 = vst [vmem:[#allocation1] ss:$2 sm:$0xff] %v172
      %v179 = vld.sshfl [vmem:[#allocation1] sm:$0xff pattern:$0x75316420]
      %v180 = vld.sshfl [vmem:[#allocation1 + $0x8] sm:$0xff pattern:$0x75316420]
      %183 = vrot.lane.b32.xlu0 %v179, 17
      %v184 = vpop.permute.xlu0 %183
      %185 = vrot.lane.b32.xlu0 %v180, 17
      %v186 = vpop.permute.xlu0 %185
      %vm187 = vcmp.lt.s32.totalorder %v175, 17
      %v188 = vsel %vm187, %v184, %v186
      %v189 = vsel %vm187, %v186, %v184
      %v190 = vadd.s32 %v175, 4294967280
      %v191 = vadd.s32 %v176, 4294967280
      %vm192 = vcmp.ge.s32.totalorder %v190, 0
      %vm193 = vcmp.ge.s32.totalorder %v191, 0
      %vm194 = vcmp.lt.s32.totalorder %v190, 256
      %vm195 = vcmp.lt.s32.totalorder %v191, 256
      %vm196 = vmand %vm192, %vm194
      %vm197 = vmand %vm193, %vm195
      %v198 = vadd.s32 %v173, 4294967295
      %vm199 = vcmp.ge.s32.totalorder %v198, 0
      %vm200 = vcmp.lt.s32.totalorder %v198, 16
      %vm201 = vmand %vm199, %vm200
      %v202 = vsel %vm201, 1, 0
      %v203 = vperm.slane %v202, 0
      %v204 = vperm.slane %v202, 1
      %vm205 = vcmp.ne.s32.totalorder %v203, 0
      %vm206 = vcmp.ne.s32.totalorder %v204, 0
      %vm207 = vmand %vm196, %vm205
      %vm208 = vmand %vm197, %vm206
      %v209 = vsel %vm207, 1, 0
      %v210 = vsel %vm208, 1, 0
      %v211 = vperm.slane %v209, 0
      %v212 = vperm.slane %v210, 0
      %vm213 = vcmp.eq.s32.totalorder %v211, 1
      %vm214 = vcmp.eq.s32.totalorder %v212, 1
      %v215 = vsel %vm213, %v189, 0.0
      %v216 = vsel %vm214, %v188, 0.0
      %v217 = vpack.c.bf16 %v215, %v215
      %v218 = vpack.c.bf16 %v216, %v216
      %v219 = vld [vmem:[%s1] sm:$0xf]
      %v220 = vld [vmem:[%s1 + $0x4] sm:$0xf]
      %221 = vst [vmem:[#allocation1] ss:$2 sm:$0xff] %v172
      %v222 = vld.sshfl [vmem:[#allocation1] sm:$0xff pattern:$0x75316420]
      %v223 = vld.sshfl [vmem:[#allocation1 + $0x8] sm:$0xff pattern:$0x75316420]
      %226 = vrot.lane.b32.xlu0 %v222, 16
      %v227 = vpop.permute.xlu0 %226
      %228 = vrot.lane.b32.xlu0 %v223, 16
      %v229 = vpop.permute.xlu0 %228
      %vm230 = vcmp.lt.s32.totalorder %v175, 16
      %v231 = vsel %vm230, %v227, %v229
      %v232 = vsel %vm230, %v229, %v227
      %v233 = vsel %vm196, 1, 0
      %v234 = vsel %vm197, 1, 0
      %vm235 = vcmp.eq.s32.totalorder %v233, 1
      %vm236 = vcmp.eq.s32.totalorder %v234, 1
      %v237 = vsel %vm235, %v232, 0.0
      %v238 = vsel %vm236, %v231, 0.0
      %v239 = vpack.c.bf16 %v237, %v237
      %v240 = vpack.c.bf16 %v238, %v238
      %s241 = scalar_lea.vmem %s1, 8
      %v242 = vld [vmem:[%s241] sm:$0xf]
      %v243 = vld [vmem:[%s241 + $0x4] sm:$0xf]
      %v246 = vunpack.c.l.b16 %v242
      %v247 = vunpack.c.l.b16 %v243
      %v248 = vpack.c.b16 %v247, %v246
      %vm249 = vcmask 31744
      %v251 = vsel %vm249, %v248, 0
      %vm253 = vcmask 1041408
      %v255 = vsel %vm253, %v239, 0
      %v258 = vsel %vm253, %v240, 0
      %260 = vmatpush.bf16.msra.mxu0 0
      %261 = vmatpush.bf16.msra.mxu0 0
      %262 = vmatpush.bf16.msra.mxu0 0
      %263 = vmatpush.bf16.msra.mxu0 0
      %264 = vmatpush.bf16.msra.mxu0 0
      %265 = vmatpush.bf16.msra.mxu0 0
      %266 = vmatpush.bf16.msra.mxu0 0
      %267 = vmatpush.bf16.msra.mxu0 %v255
      %268 = vmatmul.bf16.gmra.mxu0 %v251
      %v269 = vpop.f32.mrf.mxu0
      %v270 = vadd.f32 0.0, %v269
      %v271 = vpop.f32.mrf.mxu0
      %v272 = vadd.f32 0.0, %v271
      %273 = vdwg.mxu0
      %274 = vmatpush.bf16.msra.mxu0 0
      %275 = vmatpush.bf16.msra.mxu0 0
      %276 = vmatpush.bf16.msra.mxu0 0
      %277 = vmatpush.bf16.msra.mxu0 0
      %278 = vmatpush.bf16.msra.mxu0 0
      %279 = vmatpush.bf16.msra.mxu0 0
      %280 = vmatpush.bf16.msra.mxu0 0
      %281 = vmatpush.bf16.msra.mxu0 %v258
      %282 = vmatmul.bf16.gmra.mxu0 %v251
      %v283 = vpop.f32.mrf.mxu0
      %v284 = vadd.f32 0.0, %v283
      %v285 = vpop.f32.mrf.mxu0
      %v286 = vadd.f32 0.0, %v285
      %287 = vdwg.mxu0
      %v290 = vunpack.c.l.b16 %v219
      %v291 = vunpack.c.l.b16 %v220
      %v292 = vpack.c.b16 %v291, %v290
      %v294 = vsel %vm249, %v292, 0
      %v297 = vsel %vm253, %v217, 0
      %v300 = vsel %vm253, %v218, 0
      %302 = vmatpush.bf16.msra.mxu0 0
      %303 = vmatpush.bf16.msra.mxu0 0
      %304 = vmatpush.bf16.msra.mxu0 0
      %305 = vmatpush.bf16.msra.mxu0 0
      %306 = vmatpush.bf16.msra.mxu0 0
      %307 = vmatpush.bf16.msra.mxu0 0
      %308 = vmatpush.bf16.msra.mxu0 0
      %309 = vmatpush.bf16.msra.mxu0 %v297
      %310 = vmatmul.bf16.gmra.mxu0 %v294
      %v311 = vpop.f32.mrf.mxu0
      %v312 = vadd.f32 %v270, %v311
      %v313 = vpop.f32.mrf.mxu0
      %v314 = vadd.f32 %v272, %v313
      %315 = vdwg.mxu0
      %316 = vmatpush.bf16.msra.mxu0 0
      %317 = vmatpush.bf16.msra.mxu0 0
      %318 = vmatpush.bf16.msra.mxu0 0
      %319 = vmatpush.bf16.msra.mxu0 0
      %320 = vmatpush.bf16.msra.mxu0 0
      %321 = vmatpush.bf16.msra.mxu0 0
      %322 = vmatpush.bf16.msra.mxu0 0
      %323 = vmatpush.bf16.msra.mxu0 %v300
      %324 = vmatmul.bf16.gmra.mxu0 %v294
      %v325 = vpop.f32.mrf.mxu0
      %v326 = vadd.f32 %v284, %v325
      %v327 = vpop.f32.mrf.mxu0
      %v328 = vadd.f32 %v286, %v327
      %329 = vdwg.mxu0
      %330 = vst [vmem:[#allocation1] ss:$2 sm:$0xff] %v172
      %v331 = vld.sshfl [vmem:[#allocation1] sm:$0xff pattern:$0x75316420]
      %v332 = vld.sshfl [vmem:[#allocation1 + $0x8] sm:$0xff pattern:$0x75316420]
      %335 = vrot.lane.b32.xlu0 %v331, 15
      %v336 = vpop.permute.xlu0 %335
      %337 = vrot.lane.b32.xlu0 %v332, 15
      %v338 = vpop.permute.xlu0 %337
      %vm339 = vcmp.lt.s32.totalorder %v175, 15
      %v340 = vsel %vm339, %v336, %v338
      %v341 = vsel %vm339, %v338, %v336
      %v342 = vadd.s32 %v173, 1
      %vm343 = vcmp.ge.s32.totalorder %v342, 0
      %vm344 = vcmp.lt.s32.totalorder %v342, 16
      %vm345 = vmand %vm343, %vm344
      %v346 = vsel %vm345, 1, 0
      %v347 = vperm.slane %v346, 0
      %v348 = vperm.slane %v346, 1
      %vm349 = vcmp.ne.s32.totalorder %v347, 0
      %vm350 = vcmp.ne.s32.totalorder %v348, 0
      %vm351 = vmand %vm196, %vm349
      %vm352 = vmand %vm197, %vm350
      %v353 = vsel %vm351, 1, 0
      %v354 = vsel %vm352, 1, 0
      %v355 = vperm.slane %v353, 0
      %v356 = vperm.slane %v354, 0
      %vm357 = vcmp.eq.s32.totalorder %v355, 1
      %vm358 = vcmp.eq.s32.totalorder %v356, 1
      %v359 = vsel %vm357, %v341, 0.0
      %v360 = vsel %vm358, %v340, 0.0
      %v361 = vpack.c.bf16 %v359, %v359
      %v362 = vpack.c.bf16 %v360, %v360
      %s363 = scalar_lea.vmem %s1, 16
      %v364 = vld [vmem:[%s363] sm:$0xf]
      %v365 = vld [vmem:[%s363 + $0x4] sm:$0xf]
      %v368 = vunpack.c.l.b16 %v364
      %v369 = vunpack.c.l.b16 %v365
      %v370 = vpack.c.b16 %v369, %v368
      %v372 = vsel %vm249, %v370, 0
      %v375 = vsel %vm253, %v361, 0
      %v378 = vsel %vm253, %v362, 0
      %380 = vmatpush.bf16.msra.mxu0 0
      %381 = vmatpush.bf16.msra.mxu0 0
      %382 = vmatpush.bf16.msra.mxu0 0
      %383 = vmatpush.bf16.msra.mxu0 0
      %384 = vmatpush.bf16.msra.mxu0 0
      %385 = vmatpush.bf16.msra.mxu0 0
      %386 = vmatpush.bf16.msra.mxu0 0
      %387 = vmatpush.bf16.msra.mxu0 %v375
      %388 = vmatmul.bf16.gmra.mxu0 %v372
      %v389 = vpop.f32.mrf.mxu0
      %v390 = vadd.f32 0.0, %v389
      %v391 = vpop.f32.mrf.mxu0
      %v392 = vadd.f32 0.0, %v391
      %393 = vdwg.mxu0
      %394 = vmatpush.bf16.msra.mxu0 0
      %395 = vmatpush.bf16.msra.mxu0 0
      %396 = vmatpush.bf16.msra.mxu0 0
      %397 = vmatpush.bf16.msra.mxu0 0
      %398 = vmatpush.bf16.msra.mxu0 0
      %399 = vmatpush.bf16.msra.mxu0 0
      %400 = vmatpush.bf16.msra.mxu0 0
      %401 = vmatpush.bf16.msra.mxu0 %v378
      %402 = vmatmul.bf16.gmra.mxu0 %v372
      %v403 = vpop.f32.mrf.mxu0
      %v404 = vadd.f32 0.0, %v403
      %v405 = vpop.f32.mrf.mxu0
      %v406 = vadd.f32 0.0, %v405
      %407 = vdwg.mxu0
      %v408 = vadd.f32 %v312, %v390
      %v409 = vadd.f32 %v326, %v404
      %v410 = vadd.f32 %v314, %v392
      %v411 = vadd.f32 %v328, %v406
      %412 = vst [vmem:[#allocation1] ss:$2 sm:$0xff] %v172
      %v413 = vld.sshfl [vmem:[#allocation1] sm:$0xff pattern:$0x75316420]
      %v414 = vld.sshfl [vmem:[#allocation1 + $0x8] sm:$0xff pattern:$0x75316420]
      %417 = vrot.lane.b32.xlu0 %v413, 1
      %v418 = vpop.permute.xlu0 %417
      %419 = vrot.lane.b32.xlu0 %v414, 1
      %v420 = vpop.permute.xlu0 %419
      %vm421 = vcmp.lt.s32.totalorder %v175, 1
      %v422 = vsel %vm421, %v418, %v420
      %v423 = vsel %vm421, %v420, %v418
      %vm424 = vcmp.eq.s32.totalorder %v203, 1
      %vm425 = vcmp.eq.s32.totalorder %v204, 1
      %v426 = vsel %vm424, %v423, 0.0
      %v427 = vsel %vm425, %v422, 0.0
      %v428 = vpack.c.bf16 %v426, %v426
      %v429 = vpack.c.bf16 %v427, %v427
      %s430 = scalar_lea.vmem %s1, 24
      %v431 = vld [vmem:[%s430] sm:$0xf]
      %v432 = vld [vmem:[%s430 + $0x4] sm:$0xf]
      %v435 = vunpack.c.l.b16 %v431
      %v436 = vunpack.c.l.b16 %v432
      %v437 = vpack.c.b16 %v436, %v435
      %v439 = vsel %vm249, %v437, 0
      %v442 = vsel %vm253, %v428, 0
      %v445 = vsel %vm253, %v429, 0
      %447 = vmatpush.bf16.msra.mxu0 0
      %448 = vmatpush.bf16.msra.mxu0 0
      %449 = vmatpush.bf16.msra.mxu0 0
      %450 = vmatpush.bf16.msra.mxu0 0
      %451 = vmatpush.bf16.msra.mxu0 0
      %452 = vmatpush.bf16.msra.mxu0 0
      %453 = vmatpush.bf16.msra.mxu0 0
      %454 = vmatpush.bf16.msra.mxu0 %v442
      %455 = vmatmul.bf16.gmra.mxu0 %v439
      %v456 = vpop.f32.mrf.mxu0
      %v457 = vadd.f32 0.0, %v456
      %v458 = vpop.f32.mrf.mxu0
      %v459 = vadd.f32 0.0, %v458
      %460 = vdwg.mxu0
      %461 = vmatpush.bf16.msra.mxu0 0
      %462 = vmatpush.bf16.msra.mxu0 0
      %463 = vmatpush.bf16.msra.mxu0 0
      %464 = vmatpush.bf16.msra.mxu0 0
      %465 = vmatpush.bf16.msra.mxu0 0
      %466 = vmatpush.bf16.msra.mxu0 0
      %467 = vmatpush.bf16.msra.mxu0 0
      %468 = vmatpush.bf16.msra.mxu0 %v445
      %469 = vmatmul.bf16.gmra.mxu0 %v439
      %v470 = vpop.f32.mrf.mxu0
      %v471 = vadd.f32 0.0, %v470
      %v472 = vpop.f32.mrf.mxu0
      %v473 = vadd.f32 0.0, %v472
      %474 = vdwg.mxu0
      %v475 = vadd.f32 %v408, %v457
      %v476 = vadd.f32 %v409, %v471
      %v477 = vadd.f32 %v410, %v459
      %v478 = vadd.f32 %v411, %v473
      %479 = vst [vmem:[#allocation1] ss:$2 sm:$0xff] %v172
      %v480 = vld.sshfl [vmem:[#allocation1] sm:$0xff pattern:$0x75316420]
      %v481 = vld.sshfl [vmem:[#allocation1 + $0x8] sm:$0xff pattern:$0x75316420]
      %v484 = vpack.c.bf16 %v480, %v480
      %v485 = vpack.c.bf16 %v481, %v481
      %s486 = scalar_lea.vmem %s1, 32
      %v487 = vld [vmem:[%s486] sm:$0xf]
      %v488 = vld [vmem:[%s486 + $0x4] sm:$0xf]
      %v491 = vunpack.c.l.b16 %v487
      %v492 = vunpack.c.l.b16 %v488
      %v493 = vpack.c.b16 %v492, %v491
      %v495 = vsel %vm249, %v493, 0
      %v498 = vsel %vm253, %v484, 0
      %v501 = vsel %vm253, %v485, 0
      %503 = vmatpush.bf16.msra.mxu0 0
      %504 = vmatpush.bf16.msra.mxu0 0
      %505 = vmatpush.bf16.msra.mxu0 0
      %506 = vmatpush.bf16.msra.mxu0 0
      %507 = vmatpush.bf16.msra.mxu0 0
      %508 = vmatpush.bf16.msra.mxu0 0
      %509 = vmatpush.bf16.msra.mxu0 0
      %510 = vmatpush.bf16.msra.mxu0 %v498
      %511 = vmatmul.bf16.gmra.mxu0 %v495
      %v512 = vpop.f32.mrf.mxu0
      %v513 = vadd.f32 0.0, %v512
      %v514 = vpop.f32.mrf.mxu0
      %v515 = vadd.f32 0.0, %v514
      %516 = vdwg.mxu0
      %517 = vmatpush.bf16.msra.mxu0 0
      %518 = vmatpush.bf16.msra.mxu0 0
      %519 = vmatpush.bf16.msra.mxu0 0
      %520 = vmatpush.bf16.msra.mxu0 0
      %521 = vmatpush.bf16.msra.mxu0 0
      %522 = vmatpush.bf16.msra.mxu0 0
      %523 = vmatpush.bf16.msra.mxu0 0
      %524 = vmatpush.bf16.msra.mxu0 %v501
      %525 = vmatmul.bf16.gmra.mxu0 %v495
      %v526 = vpop.f32.mrf.mxu0
      %v527 = vadd.f32 0.0, %v526
      %v528 = vpop.f32.mrf.mxu0
      %v529 = vadd.f32 0.0, %v528
      %530 = vdwg.mxu0
      %v531 = vadd.f32 %v475, %v513
      %v532 = vadd.f32 %v476, %v527
      %v533 = vadd.f32 %v477, %v515
      %v534 = vadd.f32 %v478, %v529
      %535 = vst [vmem:[#allocation1] ss:$2 sm:$0xff] %v172
      %v536 = vld.sshfl [vmem:[#allocation1] sm:$0xff pattern:$0x75316420]
      %v537 = vld.sshfl [vmem:[#allocation1 + $0x8] sm:$0xff pattern:$0x75316420]
      %540 = vrot.lane.b32.xlu0 %v536, 127
      %v541 = vpop.permute.xlu0 %540
      %542 = vrot.lane.b32.xlu0 %v537, 127
      %v543 = vpop.permute.xlu0 %542
      %vm544 = vcmp.lt.s32.totalorder %v175, 127
      %v545 = vsel %vm544, %v541, %v543
      %v546 = vsel %vm544, %v543, %v541
      %vm547 = vcmp.eq.s32.totalorder %v347, 1
      %vm548 = vcmp.eq.s32.totalorder %v348, 1
      %v549 = vsel %vm547, %v545, 0.0
      %v550 = vsel %vm548, %v546, 0.0
      %v551 = vpack.c.bf16 %v549, %v549
      %v552 = vpack.c.bf16 %v550, %v550
      %s553 = scalar_lea.vmem %s1, 40
      %v554 = vld [vmem:[%s553] sm:$0xf]
      %v555 = vld [vmem:[%s553 + $0x4] sm:$0xf]
      %v558 = vunpack.c.l.b16 %v554
      %v559 = vunpack.c.l.b16 %v555
      %v560 = vpack.c.b16 %v559, %v558
      %v562 = vsel %vm249, %v560, 0
      %v565 = vsel %vm253, %v551, 0
      %v568 = vsel %vm253, %v552, 0
      %570 = vmatpush.bf16.msra.mxu0 0
      %571 = vmatpush.bf16.msra.mxu0 0
      %572 = vmatpush.bf16.msra.mxu0 0
      %573 = vmatpush.bf16.msra.mxu0 0
      %574 = vmatpush.bf16.msra.mxu0 0
      %575 = vmatpush.bf16.msra.mxu0 0
      %576 = vmatpush.bf16.msra.mxu0 0
      %577 = vmatpush.bf16.msra.mxu0 %v565
      %578 = vmatmul.bf16.gmra.mxu0 %v562
      %v579 = vpop.f32.mrf.mxu0
      %v580 = vadd.f32 0.0, %v579
      %v581 = vpop.f32.mrf.mxu0
      %v582 = vadd.f32 0.0, %v581
      %583 = vdwg.mxu0
      %584 = vmatpush.bf16.msra.mxu0 0
      %585 = vmatpush.bf16.msra.mxu0 0
      %586 = vmatpush.bf16.msra.mxu0 0
      %587 = vmatpush.bf16.msra.mxu0 0
      %588 = vmatpush.bf16.msra.mxu0 0
      %589 = vmatpush.bf16.msra.mxu0 0
      %590 = vmatpush.bf16.msra.mxu0 0
      %591 = vmatpush.bf16.msra.mxu0 %v568
      %592 = vmatmul.bf16.gmra.mxu0 %v562
      %v593 = vpop.f32.mrf.mxu0
      %v594 = vadd.f32 0.0, %v593
      %v595 = vpop.f32.mrf.mxu0
      %v596 = vadd.f32 0.0, %v595
      %597 = vdwg.mxu0
      %v598 = vadd.f32 %v531, %v580
      %v599 = vadd.f32 %v532, %v594
      %v600 = vadd.f32 %v533, %v582
      %v601 = vadd.f32 %v534, %v596
      %602 = vst [vmem:[#allocation1] ss:$2 sm:$0xff] %v172
      %v603 = vld.sshfl [vmem:[#allocation1] sm:$0xff pattern:$0x75316420]
      %v604 = vld.sshfl [vmem:[#allocation1 + $0x8] sm:$0xff pattern:$0x75316420]
      %607 = vrot.lane.b32.xlu0 %v603, 113
      %v608 = vpop.permute.xlu0 %607
      %609 = vrot.lane.b32.xlu0 %v604, 113
      %v610 = vpop.permute.xlu0 %609
      %vm611 = vcmp.lt.s32.totalorder %v175, 113
      %v612 = vsel %vm611, %v608, %v610
      %v613 = vsel %vm611, %v610, %v608
      %v614 = vadd.s32 %v175, 16
      %v615 = vadd.s32 %v176, 16
      %vm616 = vcmp.ge.s32.totalorder %v614, 0
      %vm617 = vcmp.ge.s32.totalorder %v615, 0
      %vm618 = vcmp.lt.s32.totalorder %v614, 256
      %vm619 = vcmp.lt.s32.totalorder %v615, 256
      %vm620 = vmand %vm616, %vm618
      %vm621 = vmand %vm617, %vm619
      %vm622 = vmand %vm620, %vm205
      %vm623 = vmand %vm621, %vm206
      %v624 = vsel %vm622, 1, 0
      %v625 = vsel %vm623, 1, 0
      %v626 = vperm.slane %v624, 0
      %v627 = vperm.slane %v625, 0
      %vm628 = vcmp.eq.s32.totalorder %v626, 1
      %vm629 = vcmp.eq.s32.totalorder %v627, 1
      %v630 = vsel %vm628, %v612, 0.0
      %v631 = vsel %vm629, %v613, 0.0
      %v632 = vpack.c.bf16 %v630, %v630
      %v633 = vpack.c.bf16 %v631, %v631
      %s634 = scalar_lea.vmem %s1, 48
      %v635 = vld [vmem:[%s634] sm:$0xf]
      %v636 = vld [vmem:[%s634 + $0x4] sm:$0xf]
      %v639 = vunpack.c.l.b16 %v635
      %v640 = vunpack.c.l.b16 %v636
      %v641 = vpack.c.b16 %v640, %v639
      %v643 = vsel %vm249, %v641, 0
      %v646 = vsel %vm253, %v632, 0
      %v649 = vsel %vm253, %v633, 0
      %651 = vmatpush.bf16.msra.mxu0 0
      %652 = vmatpush.bf16.msra.mxu0 0
      %653 = vmatpush.bf16.msra.mxu0 0
      %654 = vmatpush.bf16.msra.mxu0 0
      %655 = vmatpush.bf16.msra.mxu0 0
      %656 = vmatpush.bf16.msra.mxu0 0
      %657 = vmatpush.bf16.msra.mxu0 0
      %658 = vmatpush.bf16.msra.mxu0 %v646
      %659 = vmatmul.bf16.gmra.mxu0 %v643
      %v660 = vpop.f32.mrf.mxu0
      %v661 = vadd.f32 0.0, %v660
      %v662 = vpop.f32.mrf.mxu0
      %v663 = vadd.f32 0.0, %v662
      %664 = vdwg.mxu0
      %665 = vmatpush.bf16.msra.mxu0 0
      %666 = vmatpush.bf16.msra.mxu0 0
      %667 = vmatpush.bf16.msra.mxu0 0
      %668 = vmatpush.bf16.msra.mxu0 0
      %669 = vmatpush.bf16.msra.mxu0 0
      %670 = vmatpush.bf16.msra.mxu0 0
      %671 = vmatpush.bf16.msra.mxu0 0
      %672 = vmatpush.bf16.msra.mxu0 %v649
      %673 = vmatmul.bf16.gmra.mxu0 %v643
      %v674 = vpop.f32.mrf.mxu0
      %v675 = vadd.f32 0.0, %v674
      %v676 = vpop.f32.mrf.mxu0
      %v677 = vadd.f32 0.0, %v676
      %678 = vdwg.mxu0
      %v679 = vadd.f32 %v598, %v661
      %v680 = vadd.f32 %v599, %v675
      %v681 = vadd.f32 %v600, %v663
      %v682 = vadd.f32 %v601, %v677
      %683 = vst [vmem:[#allocation1] ss:$2 sm:$0xff] %v172
      %v684 = vld.sshfl [vmem:[#allocation1] sm:$0xff pattern:$0x75316420]
      %v685 = vld.sshfl [vmem:[#allocation1 + $0x8] sm:$0xff pattern:$0x75316420]
      %688 = vrot.lane.b32.xlu0 %v684, 112
      %v689 = vpop.permute.xlu0 %688
      %690 = vrot.lane.b32.xlu0 %v685, 112
      %v691 = vpop.permute.xlu0 %690
      %vm692 = vcmp.lt.s32.totalorder %v175, 112
      %v693 = vsel %vm692, %v689, %v691
      %v694 = vsel %vm692, %v691, %v689
      %v695 = vsel %vm620, 1, 0
      %v696 = vsel %vm621, 1, 0
      %vm697 = vcmp.eq.s32.totalorder %v695, 1
      %vm698 = vcmp.eq.s32.totalorder %v696, 1
      %v699 = vsel %vm697, %v693, 0.0
      %v700 = vsel %vm698, %v694, 0.0
      %v701 = vpack.c.bf16 %v699, %v699
      %v702 = vpack.c.bf16 %v700, %v700
      %s703 = scalar_lea.vmem %s1, 56
      %v704 = vld [vmem:[%s703] sm:$0xf]
      %v705 = vld [vmem:[%s703 + $0x4] sm:$0xf]
      %v708 = vunpack.c.l.b16 %v704
      %v709 = vunpack.c.l.b16 %v705
      %v710 = vpack.c.b16 %v709, %v708
      %v712 = vsel %vm249, %v710, 0
      %v715 = vsel %vm253, %v701, 0
      %v718 = vsel %vm253, %v702, 0
      %720 = vmatpush.bf16.msra.mxu0 0
      %721 = vmatpush.bf16.msra.mxu0 0
      %722 = vmatpush.bf16.msra.mxu0 0
      %723 = vmatpush.bf16.msra.mxu0 0
      %724 = vmatpush.bf16.msra.mxu0 0
      %725 = vmatpush.bf16.msra.mxu0 0
      %726 = vmatpush.bf16.msra.mxu0 0
      %727 = vmatpush.bf16.msra.mxu0 %v715
      %728 = vmatmul.bf16.gmra.mxu0 %v712
      %v729 = vpop.f32.mrf.mxu0
      %v730 = vadd.f32 0.0, %v729
      %v731 = vpop.f32.mrf.mxu0
      %v732 = vadd.f32 0.0, %v731
      %733 = vdwg.mxu0
      %734 = vmatpush.bf16.msra.mxu0 0
      %735 = vmatpush.bf16.msra.mxu0 0
      %736 = vmatpush.bf16.msra.mxu0 0
      %737 = vmatpush.bf16.msra.mxu0 0
      %738 = vmatpush.bf16.msra.mxu0 0
      %739 = vmatpush.bf16.msra.mxu0 0
      %740 = vmatpush.bf16.msra.mxu0 0
      %741 = vmatpush.bf16.msra.mxu0 %v718
      %742 = vmatmul.bf16.gmra.mxu0 %v712
      %v743 = vpop.f32.mrf.mxu0
      %v744 = vadd.f32 0.0, %v743
      %v745 = vpop.f32.mrf.mxu0
      %v746 = vadd.f32 0.0, %v745
      %747 = vdwg.mxu0
      %v748 = vadd.f32 %v679, %v730
      %v749 = vadd.f32 %v680, %v744
      %v750 = vadd.f32 %v681, %v732
      %v751 = vadd.f32 %v682, %v746
      %752 = vst [vmem:[#allocation1] ss:$2 sm:$0xff] %v172
      %v753 = vld.sshfl [vmem:[#allocation1] sm:$0xff pattern:$0x75316420]
      %v754 = vld.sshfl [vmem:[#allocation1 + $0x8] sm:$0xff pattern:$0x75316420]
      %757 = vrot.lane.b32.xlu0 %v753, 111
      %v758 = vpop.permute.xlu0 %757
      %759 = vrot.lane.b32.xlu0 %v754, 111
      %v760 = vpop.permute.xlu0 %759
      %vm761 = vcmp.lt.s32.totalorder %v175, 111
      %v762 = vsel %vm761, %v758, %v760
      %v763 = vsel %vm761, %v760, %v758
      %vm764 = vmand %vm620, %vm349
      %vm765 = vmand %vm621, %vm350
      %v766 = vsel %vm764, 1, 0
      %v767 = vsel %vm765, 1, 0
      %v768 = vperm.slane %v766, 0
      %v769 = vperm.slane %v767, 0
      %vm770 = vcmp.eq.s32.totalorder %v768, 1
      %vm771 = vcmp.eq.s32.totalorder %v769, 1
      %v772 = vsel %vm770, %v762, 0.0
      %v773 = vsel %vm771, %v763, 0.0
      %v774 = vpack.c.bf16 %v772, %v772
      %v775 = vpack.c.bf16 %v773, %v773
      %s776 = scalar_lea.vmem %s1, 64
      %v777 = vld [vmem:[%s776] sm:$0xf]
      %v778 = vld [vmem:[%s776 + $0x4] sm:$0xf]
      %v781 = vunpack.c.l.b16 %v777
      %v782 = vunpack.c.l.b16 %v778
      %v783 = vpack.c.b16 %v782, %v781
      %v785 = vsel %vm249, %v783, 0
      %v788 = vsel %vm253, %v774, 0
      %v791 = vsel %vm253, %v775, 0
      %793 = vmatpush.bf16.msra.mxu0 0
      %794 = vmatpush.bf16.msra.mxu0 0
      %795 = vmatpush.bf16.msra.mxu0 0
      %796 = vmatpush.bf16.msra.mxu0 0
      %797 = vmatpush.bf16.msra.mxu0 0
      %798 = vmatpush.bf16.msra.mxu0 0
      %799 = vmatpush.bf16.msra.mxu0 0
      %800 = vmatpush.bf16.msra.mxu0 %v788
      %801 = vmatmul.bf16.gmra.mxu0 %v785
      %v802 = vpop.f32.mrf.mxu0
      %v803 = vadd.f32 0.0, %v802
      %v804 = vpop.f32.mrf.mxu0
      %v805 = vadd.f32 0.0, %v804
      %806 = vdwg.mxu0
      %807 = vmatpush.bf16.msra.mxu0 0
      %808 = vmatpush.bf16.msra.mxu0 0
      %809 = vmatpush.bf16.msra.mxu0 0
      %810 = vmatpush.bf16.msra.mxu0 0
      %811 = vmatpush.bf16.msra.mxu0 0
      %812 = vmatpush.bf16.msra.mxu0 0
      %813 = vmatpush.bf16.msra.mxu0 0
      %814 = vmatpush.bf16.msra.mxu0 %v791
      %815 = vmatmul.bf16.gmra.mxu0 %v785
      %v816 = vpop.f32.mrf.mxu0
      %v817 = vadd.f32 0.0, %v816
      %v818 = vpop.f32.mrf.mxu0
      %v819 = vadd.f32 0.0, %v818
      %820 = vdwg.mxu0
      %v821 = vadd.f32 %v748, %v803
      %v822 = vadd.f32 %v749, %v817
      %v823 = vadd.f32 %v750, %v805
      %v824 = vadd.f32 %v751, %v819
      %v825 = vmul.f32 %v821, %v823
      %v826 = vmul.f32 %v822, %v824
      %827 = vst [vmem:[%s170] sm:$0xff] %v825
      %828 = vst [vmem:[%s170 + $0x8] sm:$0xff] %v826
      %p829 = scmp.lt.s32.totalorder %s14, 1
      %s830 = scalar_select %p829, %s14, 1
      %s831 = smul.addr %s830, 2
      %s832 = smul.addr %s831, 8
      %s833 = scalar_lea.vmem %s3, %s832
      // Predicated region
      $region33: #{bconv2d.1} parent=31 // pred_check
        %p834 = pneg %p100
      $region34: #{bconv2d.1} parent=31 // pred_check_branch
        %836 = sbr.rel (%p834) target = $region36
      $region35: #{bconv2d.1} parent=31 // pred_region
        _
      $region36: #{bconv2d.1} parent=31 // pred_fallthru
        _
    $region32: #{bconv2d.1} parent=5 // pred_fallthru
      _
    %p837 = scmp.le.s32.totalorder 2, %s9
    // Predicated region
    $region37: #{bconv2d.1} parent=5 // pred_check
      %p838 = pneg %p837
    $region38: #{bconv2d.1} parent=5 // pred_check_branch
      %840 = sbr.rel (%p838) target = $region40
    $region39: #{bconv2d.1} parent=5 // pred_region
      %s841 = ssub.s32 %s9, 2
      // Predicated region
      $region41: #{bconv2d.1} parent=39 // pred_check
        %p842 = pneg %p106
      $region42: #{bconv2d.1} parent=39 // pred_check_branch
        %844 = sbr.rel (%p842) target = $region44
      $region43: #{bconv2d.1} parent=39 // pred_region
        %p845 = scmp.lt.s32.totalorder %s15, 1
        %s846 = scalar_select %p845, %s15, 1
        %s847 = smul.addr %s846, 2
        %s848 = smul.addr %s847, 8
        %s849 = scalar_lea.vmem %s3, %s848
      $region44: #{bconv2d.1} parent=39 // pred_fallthru
        _
    $region40: #{bconv2d.1} parent=5 // pred_fallthru
      _
  $region6: #{bconv2d.1} parent=0 // loop_footer
    %s13 = sadd.s32 1, %s9
  $region7: #{bconv2d.1} parent=0 // loop_footer_branch
    %8 = sbr.rel target = $region3
  $region8: #{bconv2d.1} parent=0 // loop_exit
    _

</llo_original>
